<compile_context>
chip_gen: v6e
topology: v6e:2x2x1
jax: 0.10.0
libtpu: 0.0.40
codegen_flags: <defaults>
</compile_context>

<pallas_src>
import math

import jax
import jax.numpy as jnp
from jax import lax
from jax.experimental import pallas as pl
from jax.experimental.pallas import tpu as pltpu


# ------------------------------ tiling helper ---------------------------------
def _pick_tile(dim, preferred, align):
    """Largest divisor of `dim` that is a multiple of `align` and <= `preferred`.
    Falls back to the full extent (block == array dim is always layout-legal)."""
    preferred = min(preferred, dim)
    t = (preferred // align) * align
    while t >= align:
        if dim % t == 0:
            return t
        t -= align
    return dim


# ----------------------------- blocked linear ---------------------------------
def linear_kernel(x_ref, w_ref, b_ref, o_ref, acc_ref):
    k = pl.program_id(2)

    @pl.when(k == 0)
    def _():
        acc_ref[...] = jnp.zeros_like(acc_ref)

    acc_ref[...] += jnp.dot(
        x_ref[...].astype(jnp.bfloat16),      # MXU is bf16-native; accumulate f32
        w_ref[...],                            # already bf16 (prepared once)
        preferred_element_type=jnp.float32,
    )

    @pl.when(k == pl.num_programs(2) - 1)
    def _():
        o_ref[...] = (acc_ref[...] + b_ref[...]).astype(o_ref.dtype)


def pallas_linear(x, w_t, b, *, out_dtype=jnp.float32, tm=512, tn=512, tk=512):
    """x: [M, K] f32; w_t: [K, N] bf16 (pre-transposed); b: [N] f32 -> [M, N]."""
    M, K = x.shape
    K2, N = w_t.shape
    assert K == K2

    # Largest aligned divisors (512-wide tiles ~85% of HBM roofline; keeps
    # pipelining alive on non-divisible shapes instead of one giant block).
    tm = _pick_tile(M, tm, 8)
    tn = _pick_tile(N, tn, 128)
    tk = _pick_tile(K, tk, 128)

    return pl.pallas_call(
        linear_kernel,
        grid=(M // tm, N // tn, K // tk),
        in_specs=[
            pl.BlockSpec((tm, tk), lambda i, j, k: (i, k)),
            pl.BlockSpec((tk, tn), lambda i, j, k: (k, j)),
            pl.BlockSpec((1, tn), lambda i, j, k: (0, j)),
        ],
        out_specs=pl.BlockSpec((tm, tn), lambda i, j, k: (i, j)),
        out_shape=jax.ShapeDtypeStruct((M, N), out_dtype),
        scratch_shapes=[pltpu.VMEM((tm, tn), jnp.float32)],
        compiler_params=pltpu.CompilerParams(
            dimension_semantics=("parallel", "parallel", "arbitrary")
        ),
    )(x, w_t, b.reshape(1, N))


# ------------------- fused attention (+ fc_o epilogue) kernel -----------------
def make_attn_kernel(n_heads, head_dim, with_attn):
    def kernel(q_ref, k_ref, v_ref, wo_ref, bo_ref, *outs):
        if with_attn:
            out_ref, attn_ref = outs
        else:
            (out_ref,) = outs
            attn_ref = None

        tq = q_ref.shape[1]
        H = q_ref.shape[2]

        q_all = q_ref[0]  # [tq, H] bf16, pre-scaled by 1/sqrt(head_dim) via fc_q
        k_all = k_ref[0]  # [Sk, H] bf16
        v_all = v_ref[0]  # [Sk, H] bf16

        # fc_o distributed over heads: out = sum_h ctx_h @ Wo_h  (+ bias at the end).
        out_acc = jnp.zeros((tq, H), jnp.float32)

        # All heads of this (batch, q-tile) in one grid step (amortizes per-step
        # overhead, static lane slices, no per-(b,h) 8-wide tiles).
        # TODO(synk): static unroll doesn't bound live ranges; when head_dim % 128 == 0
        # switch to lax.fori_loop with pl.ds lane slices (or heads as a grid axis).
        for h in range(n_heads):
            sl = slice(h * head_dim, (h + 1) * head_dim)
            q_h = q_all[:, sl]                                    # [tq, d]
            k_h = k_all[:, sl]                                    # [Sk, d]
            v_h = v_all[:, sl]                                    # [Sk, d]

            # energy = q_h @ k_h^T, contracting the head dim (no materialized .T)
            energy = lax.dot_general(
                q_h, k_h, (((1,), (1,)), ((), ())),
                preferred_element_type=jnp.float32,
            )                                                     # [tq, Sk] f32
            m = jnp.max(energy, axis=-1, keepdims=True)
            # Max-subtract in f32, exp in bf16 (EUP is the binding unit on v6e/v7x).
            e = jnp.exp((energy - m).astype(jnp.bfloat16))        # [tq, Sk] bf16
            denom = jnp.sum(e.astype(jnp.float32), axis=-1, keepdims=True)
            inv = pl.reciprocal(denom, approx=True)               # EUP slot, ~free
            p16 = (e.astype(jnp.float32) * inv).astype(jnp.bfloat16)

            if attn_ref is not None:
                attn_ref[0, h] = p16.astype(attn_ref.dtype)       # bf16 writeback

            ctx_h = jnp.dot(p16, v_h, preferred_element_type=jnp.float32)  # [tq, d]
            out_acc = out_acc + jnp.dot(
                ctx_h.astype(jnp.bfloat16), wo_ref[h],            # Wo_h: [d, H]
                preferred_element_type=jnp.float32,
            )

        out_ref[0] = (out_acc + bo_ref[...]).astype(out_ref.dtype)

    return kernel


def pallas_mha_attention(q, k, v, wo_heads, bo, n_heads, *, tq=256,
                         return_attention=True):
    """q: [B, Sq, H]; k, v: [B, Sk, H] (bf16, heads packed in H);
    wo_heads: [n_heads, head_dim, H] bf16 (fc_o weight split per head).

    Returns (out [B, Sq, H] f32, attn [B, n_heads, Sq, Sk] bf16 or None)."""
    B, Sq, H = q.shape
    _, Sk, _ = k.shape
    head_dim = H // n_heads
    assert wo_heads.shape == (n_heads, head_dim, H)

    # tq=256 fills the 2x256x256 MXU on v6e/v7x; on v5e 128 already fills the
    # 128-wide MXU (pass tq=128 there to save VMEM).
    tq = _pick_tile(Sq, tq, 8)

    kernel = make_attn_kernel(n_heads, head_dim, return_attention)

    out_specs = [pl.BlockSpec((1, tq, H), lambda b, qi: (b, qi, 0))]
    out_shape = [jax.ShapeDtypeStruct((B, Sq, H), jnp.float32)]
    if return_attention:
        out_specs.append(
            pl.BlockSpec((1, n_heads, tq, Sk), lambda b, qi: (b, 0, qi, 0)))
        # bf16 attention probs: halves the largest VMEM block and HBM writeback.
        out_shape.append(
            jax.ShapeDtypeStruct((B, n_heads, Sq, Sk), jnp.bfloat16))

    # Rough per-step VMEM footprint (worst case: everything double-buffered);
    # raise the scoped limit above the 32 MiB default when needed (v7x: 64 MiB phys).
    est = (2 * tq * H * 2                                   # q blocks (bf16)
           + 2 * 2 * Sk * H * 2                             # k + v blocks (bf16)
           + 2 * n_heads * head_dim * H * 2 + 2 * H * 4     # wo + bo
           + 2 * tq * H * 4                                 # out blocks (f32)
           + (2 * n_heads * tq * Sk * 2 if return_attention else 0)
           + 4 * tq * Sk * 4 + tq * H * 4)                  # in-kernel temporaries
    compiler_kwargs = dict(dimension_semantics=("parallel", "parallel"))
    if est > 30 * (1 << 20):
        compiler_kwargs["vmem_limit_bytes"] = min(int(est * 1.25), 100 * (1 << 20))

    def run(single_buffer_resident):
        def resident_spec(shape, imap):
            # K/V block indices are constant over the q-tile axis and wo/bo over the
            # whole grid, so their second pipeline buffer is dead weight.
            if single_buffer_resident:
                return pl.BlockSpec(shape, imap, pipeline_mode=pl.Buffered(1))
            return pl.BlockSpec(shape, imap)

        in_specs = [
            pl.BlockSpec((1, tq, H), lambda b, qi: (b, qi, 0)),
            resident_spec((1, Sk, H), lambda b, qi: (b, 0, 0)),
            resident_spec((1, Sk, H), lambda b, qi: (b, 0, 0)),
            resident_spec((n_heads, head_dim, H), lambda b, qi: (0, 0, 0)),
            resident_spec((1, H), lambda b, qi: (0, 0)),
        ]
        return pl.pallas_call(
            kernel,
            grid=(B, Sq // tq),
            in_specs=in_specs,
            out_specs=out_specs,
            out_shape=out_shape,
            compiler_params=pltpu.CompilerParams(**compiler_kwargs),
        )(q, k, v, wo_heads, bo.reshape(1, H))

    try:
        outs = run(True)
    except Exception:
        # TODO(synk): pl.Buffered(1) single-buffering rejected by this JAX/Mosaic
        # build; fall back to default double-buffered pipelining.
        outs = run(False)

    if return_attention:
        return outs[0], outs[1]
    return outs[0], None


# ------------------------------ module wrapper ---------------------------------
def prepare_params(params, n_heads):
    """One-time prep (outside the hot path): transpose weights to [H_in, H_out],
    cast to bf16, fold 1/sqrt(head_dim) into fc_q, pre-split fc_o per head, and
    build fused QKV weights for the self-attention call pattern."""
    H = params["wq"].shape[0]
    head_dim = H // n_heads
    inv_scale = 1.0 / math.sqrt(head_dim)   # plain Python constant

    wq_t = (params["wq"].T * inv_scale).astype(jnp.bfloat16)
    bq = (params["bq"] * inv_scale).astype(jnp.float32)
    wk_t = params["wk"].T.astype(jnp.bfloat16)
    bk = params["bk"].astype(jnp.float32)
    wv_t = params["wv"].T.astype(jnp.bfloat16)
    bv = params["bv"].astype(jnp.float32)
    wo_t = params["wo"].T.astype(jnp.bfloat16)              # [H_in, H_out]

    return {
        "wq_t": wq_t, "bq": bq,
        "wk_t": wk_t, "bk": bk,
        "wv_t": wv_t, "bv": bv,
        # Fused QKV projection (self-attention reads x from HBM once).
        "wqkv_t": jnp.concatenate([wq_t, wk_t, wv_t], axis=1),   # [H, 3H]
        "bqkv": jnp.concatenate([bq, bk, bv], axis=0),           # [3H]
        # fc_o pre-split per head so the kernel never sublane-slices packed bf16.
        "wo_heads": wo_t.reshape(n_heads, head_dim, H),
        "bo": params["bo"].astype(jnp.float32),
    }


def multi_head_attention(prep, query, key, value, n_heads, *, return_attention=True):
    """Forward pass equivalent to MultiHeadAttentionLayer.forward (mask=None, eval)."""
    B, Sq, H = query.shape
    Sk = key.shape[1]

    if (query is key) and (key is value):
        # Self-attention: one fused QKV projection ([H, 3H] weight, x read once).
        qkv = pallas_linear(query.reshape(B * Sq, H), prep["wqkv_t"], prep["bqkv"],
                            out_dtype=jnp.bfloat16)
        Q = qkv[:, :H].reshape(B, Sq, H)
        K = qkv[:, H:2 * H].reshape(B, Sq, H)
        V = qkv[:, 2 * H:].reshape(B, Sq, H)
    else:
        # Cross-attention: separate projections (supports Sq != Sk).
        Q = pallas_linear(query.reshape(B * Sq, H), prep["wq_t"], prep["bq"],
                          out_dtype=jnp.bfloat16).reshape(B, Sq, H)
        K = pallas_linear(key.reshape(B * Sk, H), prep["wk_t"], prep["bk"],
                          out_dtype=jnp.bfloat16).reshape(B, Sk, H)
        V = pallas_linear(value.reshape(B * Sk, H), prep["wv_t"], prep["bv"],
                          out_dtype=jnp.bfloat16).reshape(B, Sk, H)

    # Attention with fused head split/merge and fc_o epilogue.
    return pallas_mha_attention(Q, K, V, prep["wo_heads"], prep["bo"], n_heads,
                                return_attention=return_attention)


def init_params(key, hid_dim):
    """Deterministic init mimicking nn.Linear defaults (uniform +/- 1/sqrt(fan_in))."""
    ks = jax.random.split(key, 8)
    bound = 1.0 / math.sqrt(hid_dim)
    u = lambda k, shape: jax.random.uniform(k, shape, jnp.float32, -bound, bound)
    return {
        "wq": u(ks[0], (hid_dim, hid_dim)), "bq": u(ks[1], (hid_dim,)),
        "wk": u(ks[2], (hid_dim, hid_dim)), "bk": u(ks[3], (hid_dim,)),
        "wv": u(ks[4], (hid_dim, hid_dim)), "bv": u(ks[5], (hid_dim,)),
        "wo": u(ks[6], (hid_dim, hid_dim)), "bo": u(ks[7], (hid_dim,)),
    }


# Pure-JAX f32 reference for correctness checking.
def reference_mha(params, query, key, value, n_heads):
    B, Sq, H = query.shape
    Sk = key.shape[1]
    hd = H // n_heads
    lin = lambda x, w, b: x @ w.T + b
    Q = lin(query, params["wq"], params["bq"]).reshape(B, Sq, n_heads, hd).transpose(0, 2, 1, 3)
    K = lin(key, params["wk"], params["bk"]).reshape(B, Sk, n_heads, hd).transpose(0, 2, 1, 3)
    V = lin(value, params["wv"], params["bv"]).reshape(B, Sk, n_heads, hd).transpose(0, 2, 1, 3)
    energy = jnp.einsum("bhqd,bhkd->bhqk", Q, K) / math.sqrt(hd)
    attn = jax.nn.softmax(energy, axis=-1)
    x = jnp.einsum("bhqk,bhkd->bhqd", attn, V).transpose(0, 2, 1, 3).reshape(B, Sq, H)
    return lin(x, params["wo"], params["bo"]), attn


if __name__ == "__main__":
    B, S, HID, N_HEADS = 2, 8, 32, 4

    root = jax.random.PRNGKey(0)
    kp, kq, kk, kv = jax.random.split(root, 4)
    params = init_params(kp, HID)
    prep = prepare_params(params, N_HEADS)

    query = jax.random.normal(kq, (B, S, HID), jnp.float32)
    key_in = jax.random.normal(kk, (B, S, HID), jnp.float32)
    value = jax.random.normal(kv, (B, S, HID), jnp.float32)

    # Cross-attention call pattern (distinct q/k/v -> separate projections).
    out, attn = multi_head_attention(prep, query, key_in, value, N_HEADS)
    out = jax.block_until_ready(out)
    attn = jax.block_until_ready(attn)

    # Fast path that skips the O(S^2) attention-probability HBM writeback.
    out_noattn, _ = multi_head_attention(prep, query, key_in, value, N_HEADS,
                                         return_attention=False)
    out_noattn = jax.block_until_ready(out_noattn)

    # Self-attention call pattern (query is key is value -> fused QKV projection).
    out_self, attn_self = multi_head_attention(prep, query, query, query, N_HEADS)
    out_self = jax.block_until_ready(out_self)

    ref_out, ref_attn = reference_mha(params, query, key_in, value, N_HEADS)
    ref_out_s, ref_attn_s = reference_mha(params, query, query, query, N_HEADS)

    assert out.shape == (B, S, HID)
    assert attn.shape == (B, N_HEADS, S, S)
    attn_f32 = attn.astype(jnp.float32)

    # bf16 MXU matmuls / bf16 exp / bf16 attn storage vs a pure-f32 reference.
    assert jnp.allclose(out, ref_out, atol=5e-2, rtol=5e-2)
    assert jnp.allclose(attn_f32, ref_attn, atol=5e-2, rtol=5e-2)
    # Rows sum to ~1 (bf16 attn storage + approx EUP reciprocal -> loosened tol).
    assert jnp.allclose(attn_f32.sum(-1), 1.0, atol=1e-2)
    assert jnp.allclose(out_noattn, out, atol=1e-5, rtol=1e-5)
    assert jnp.allclose(out_self, ref_out_s, atol=5e-2, rtol=5e-2)
    assert jnp.allclose(attn_self.astype(jnp.float32), ref_attn_s, atol=5e-2, rtol=5e-2)

    print("KERNEL_OK")
</pallas_src>

<mosaic_0001>
module attributes {stable_mosaic.version = 11 : i64} {
  func.func @linear_kernel(%arg0: i32, %arg1: i32, %arg2: i32, %arg3: memref<16x32xf32, #tpu.memory_space<vmem>>, %arg4: memref<32x32xbf16, #tpu.memory_space<vmem>>, %arg5: memref<1x32xf32, #tpu.memory_space<vmem>>, %arg6: memref<16x32xbf16, #tpu.memory_space<vmem>>, %arg7: memref<16x32xf32, #tpu.memory_space<vmem>>) attributes {dimension_semantics = [#tpu.dimension_semantics<parallel>, #tpu.dimension_semantics<parallel>, #tpu.dimension_semantics<arbitrary>], iteration_bounds = array<i64: 1, 1, 1>, scalar_prefetch = 0 : i64, scratch_operands = 1 : i64, tpu.core_type = #tpu.core_type<tc>, window_params = [{transform_indices = @transform_0, window_bounds = array<i64: 16, 32>}, {transform_indices = @transform_1, window_bounds = array<i64: 32, 32>}, {transform_indices = @transform_2, window_bounds = array<i64: 1, 32>}, {transform_indices = @transform_3, window_bounds = array<i64: 16, 32>}]} {
    %c0_i32 = arith.constant 0 : i32
    %0 = arith.cmpi eq, %arg2, %c0_i32 : i32
    %1 = arith.extui %0 : i1 to i32
    %c0_i32_0 = arith.constant 0 : i32
    %2 = arith.cmpi ne, %1, %c0_i32_0 : i32
    scf.if %2 {
      %cst_10 = arith.constant 0.000000e+00 : f32
      %13 = vector.broadcast %cst_10 : f32 to vector<16x32xf32>
      %c0_11 = arith.constant 0 : index
      %c0_12 = arith.constant 0 : index
      %14 = vector.load %arg7[%c0_11, %c0_12] : memref<16x32xf32, #tpu.memory_space<vmem>>, vector<16x32xf32>
      tpu.vector_store %arg7[%c0_11, %c0_12], %13 {strides = array<i32>} : memref<16x32xf32, #tpu.memory_space<vmem>>, vector<16x32xf32>,
    } else {
    }
    %c0 = arith.constant 0 : index
    %c0_1 = arith.constant 0 : index
    %3 = vector.load %arg7[%c0, %c0_1] : memref<16x32xf32, #tpu.memory_space<vmem>>, vector<16x32xf32>
    %c0_2 = arith.constant 0 : index
    %c0_3 = arith.constant 0 : index
    %4 = vector.load %arg3[%c0_2, %c0_3] : memref<16x32xf32, #tpu.memory_space<vmem>>, vector<16x32xf32>
    %5 = arith.truncf %4 : vector<16x32xf32> to vector<16x32xbf16>
    %c0_4 = arith.constant 0 : index
    %c0_5 = arith.constant 0 : index
    %6 = vector.load %arg4[%c0_4, %c0_5] : memref<32x32xbf16, #tpu.memory_space<vmem>>, vector<32x32xbf16>
    %cst = arith.constant dense<0.000000e+00> : vector<16x32xf32>
    %7 = tpu.matmul %5, %6, %cst {dimension_numbers = #tpu.dot_dimension_numbers<[1], [0], [0], [1], [0, 0, 1, 1], [], []>} : vector<16x32xbf16>, vector<32x32xbf16>, vector<16x32xf32> -> vector<16x32xf32>
    %8 = arith.addf %3, %7 : vector<16x32xf32>
    %c0_6 = arith.constant 0 : index
    %c0_7 = arith.constant 0 : index
    %9 = vector.load %arg7[%c0_6, %c0_7] : memref<16x32xf32, #tpu.memory_space<vmem>>, vector<16x32xf32>
    tpu.vector_store %arg7[%c0_6, %c0_7], %8 {strides = array<i32>} : memref<16x32xf32, #tpu.memory_space<vmem>>, vector<16x32xf32>,
    %c0_i32_8 = arith.constant 0 : i32
    %10 = arith.cmpi eq, %arg2, %c0_i32_8 : i32
    %11 = arith.extui %10 : i1 to i32
    %c0_i32_9 = arith.constant 0 : i32
    %12 = arith.cmpi ne, %11, %c0_i32_9 : i32
    scf.if %12 {
      %c0_10 = arith.constant 0 : index
      %c0_11 = arith.constant 0 : index
      %13 = vector.load %arg7[%c0_10, %c0_11] : memref<16x32xf32, #tpu.memory_space<vmem>>, vector<16x32xf32>
      %c0_12 = arith.constant 0 : index
      %c0_13 = arith.constant 0 : index
      %14 = vector.load %arg5[%c0_12, %c0_13] : memref<1x32xf32, #tpu.memory_space<vmem>>, vector<1x32xf32>
      %15 = vector.broadcast %14 : vector<1x32xf32> to vector<16x32xf32>
      %16 = arith.addf %13, %15 : vector<16x32xf32>
      %17 = arith.truncf %16 : vector<16x32xf32> to vector<16x32xbf16>
      %c0_14 = arith.constant 0 : index
      %c0_15 = arith.constant 0 : index
      %18 = vector.load %arg6[%c0_14, %c0_15] : memref<16x32xbf16, #tpu.memory_space<vmem>>, vector<16x32xbf16>
      tpu.vector_store %arg6[%c0_14, %c0_15], %17 {strides = array<i32>} : memref<16x32xbf16, #tpu.memory_space<vmem>>, vector<16x32xbf16>,
    } else {
    }
    return
  }
  func.func @transform_0(%arg0: i32, %arg1: i32, %arg2: i32) -> (i32, i32) {
    %c0_i32 = arith.constant 0 : i32
    return %arg0, %arg2 : i32, i32
  }
  func.func @transform_1(%arg0: i32, %arg1: i32, %arg2: i32) -> (i32, i32) {
    %c0_i32 = arith.constant 0 : i32
    return %arg2, %arg1 : i32, i32
  }
  func.func @transform_2(%arg0: i32, %arg1: i32, %arg2: i32) -> (i32, i32) {
    %c0_i32 = arith.constant 0 : i32
    %c0_i32_0 = arith.constant 0 : i32
    return %c0_i32, %arg1 : i32, i32
  }
  func.func @transform_3(%arg0: i32, %arg1: i32, %arg2: i32) -> (i32, i32) {
    %c0_i32 = arith.constant 0 : i32
    return %arg0, %arg1 : i32, i32
  }
}

</mosaic_0001>

<llo_original>
// kernel: tpu_custom_call.1
$region0: #{tpu_custom_call.1}
  #allocation0 [shape = 'u32[]', space=smem, size = 0x4, offset = 0x4, fixed_abs, tag = 'smem constant byte address 0x4 - core index']
  #allocation1 [shape = 'u32[144,128]{1,0:T(1,128)}', space=vmem, size = 0x12000, scoped, tag = 'internal scratch']
  #allocation2 [shape = 'f32[16,32]{1,0:T(8,128)}', space=vmem, size = 0x2000, scoped, tag = 'scratch operand']
  %s0 = inlined_call_operand.hbm [shape: f32[16,32], index: 0, kind: input, shape index: {}]
  %s1 = inlined_call_operand.hbm [shape: bf16[32,32], index: 1, kind: input, shape index: {}]
  %s2 = inlined_call_operand.vmem [shape: f32[1,32], index: 2, kind: input, shape index: {}]
  %s3 = inlined_call_operand.hbm [shape: bf16[16,32], index: 3, kind: output, shape index: {}]
  %s4 = sld [smem:[#allocation0]]
  $region38: #{tpu_custom_call.1} parent=0
    _
  %s6 = ssub.s32 1, %s4
  %s7 = scalar_select 0, %s6, %s4
  $region1: #{tpu_custom_call.1} parent=0
    #allocation3 [shape = 'u8[8192]{0}', space=vmem, size = 0x2000, scoped, tag = 'input window, operand 0, single buffered']
    #allocation4 [shape = 's32[1]{0}', space=sflag, size = 0x4, scoped, tag = 'scoped memory for tpu_custom_call.1']
    #allocation5 [shape = 's32[1]{0}', space=sflag, size = 0x4, scoped, tag = 'scoped memory for tpu_custom_call.1']
    #allocation6 [shape = 'u8[8192]{0}', space=vmem, size = 0x2000, scoped, tag = 'input window, operand 1, single buffered']
    #allocation7 [shape = 's32[1]{0}', space=sflag, size = 0x4, scoped, tag = 'scoped memory for tpu_custom_call.1']
    #allocation8 [shape = 'u8[4096]{0}', space=vmem, size = 0x1000, scoped, tag = 'output window, operand 0, single buffered']
    %8 = vsyncpa [#allocation4], 0
    %9 = vsyncpa [#allocation7], 0
    %10 = vsyncpa [#allocation5], 0
    // Predicated region
    $region2: #{tpu_custom_call.1} parent=1 // pred_check
      _
    $region3: #{tpu_custom_call.1} parent=1 // pred_check_branch
      %12 = sbr.rel (0) target = $region5
    $region4: #{tpu_custom_call.1} parent=1 // pred_region
      %s14 = ssub.s32 256, 256
      %15 = vsyncadd [#allocation4], %s14
      %s16 = sshll.u32 [#allocation3], 4
      %s17 = int_to_ptr.vmem [resolvable:$true] %s16
      %22 = dma.hbm_to_vmem [thread:$0]  %s0, 256, %s17, [#allocation4], 128, 128, 8
    $region5: #{tpu_custom_call.1} parent=1 // pred_fallthru
      _
    // Predicated region
    $region6: #{tpu_custom_call.1} parent=1 // pred_check
      _
    $region7: #{tpu_custom_call.1} parent=1 // pred_check_branch
      %24 = sbr.rel (0) target = $region9
    $region8: #{tpu_custom_call.1} parent=1 // pred_region
      %s26 = ssub.s32 256, 256
      %27 = vsyncadd [#allocation7], %s26
      %s28 = sshll.u32 [#allocation6], 4
      %s29 = int_to_ptr.vmem [resolvable:$true] %s28
      %34 = dma.hbm_to_vmem [thread:$0]  %s1, 256, %s29, [#allocation7], 64, 64, 4
    $region9: #{tpu_custom_call.1} parent=1 // pred_fallthru
      _
    // Predicated region
    $region10: #{tpu_custom_call.1} parent=1 // pred_check
      _
    $region11: #{tpu_custom_call.1} parent=1 // pred_check_branch
      %36 = sbr.rel (0) target = $region13
    $region12: #{tpu_custom_call.1} parent=1 // pred_region
      _
    $region13: #{tpu_custom_call.1} parent=1 // pred_fallthru
      _
    // Predicated region
    $region14: #{tpu_custom_call.1} parent=1 // pred_check
      _
    $region15: #{tpu_custom_call.1} parent=1 // pred_check_branch
      %38 = sbr.rel (0) target = $region17
    $region16: #{tpu_custom_call.1} parent=1 // pred_region
      %39 = dma.done [#allocation4], 256
    $region17: #{tpu_custom_call.1} parent=1 // pred_fallthru
      _
    // Predicated region
    $region18: #{tpu_custom_call.1} parent=1 // pred_check
      _
    $region19: #{tpu_custom_call.1} parent=1 // pred_check_branch
      %41 = sbr.rel (0) target = $region21
    $region20: #{tpu_custom_call.1} parent=1 // pred_region
      %42 = dma.done [#allocation7], 256
    $region21: #{tpu_custom_call.1} parent=1 // pred_fallthru
      _
    %p44 = scmp.eq.s32.totalorder 0, 0
    // Predicated region
    $region22: #{tpu_custom_call.1} parent=1 // pred_check
      %p45 = pneg %p44
    $region23: #{tpu_custom_call.1} parent=1 // pred_check_branch
      %47 = sbr.rel (%p45) target = $region25
    $region24: #{tpu_custom_call.1} parent=1 // pred_region
      %vm48 = vcmask 261120
      %49 = vst.msk [vmem:[#allocation2] sm:$0xff] %vm48, 0.0
      %50 = vst.msk [vmem:[#allocation2 + $0x8] sm:$0xff] %vm48, 0.0
    $region25: #{tpu_custom_call.1} parent=1 // pred_fallthru
      _
    %v51 = vld [vmem:[#allocation2] sm:$0xff]
    %v52 = vld [vmem:[#allocation2 + $0x8] sm:$0xff]
    %v53 = vld [vmem:[#allocation3] sm:$0xff]
    %v54 = vld [vmem:[#allocation3 + $0x8] sm:$0xff]
    %v55 = vpack.c.bf16 %v54, %v53
    %v56 = vld [vmem:[#allocation6] sm:$0xf]
    %v57 = vld [vmem:[#allocation6 + $0x4] sm:$0xf]
    %v58 = vld [vmem:[#allocation6 + $0x8] sm:$0xf]
    %v59 = vld [vmem:[#allocation6 + $0xc] sm:$0xf]
    %v64 = vunpack.c.l.b16 %v56
    %v65 = vunpack.c.l.b16 %v57
    %v66 = vunpack.c.l.b16 %v58
    %v67 = vunpack.c.l.b16 %v59
    %v68 = vpack.c.b16 %v65, %v64
    %v69 = vpack.c.b16 %v67, %v66
    %vm72 = vcmask 261120
    %v74 = vsel %vm72, %v55, 0
    %76 = vmatprep.subr.bf16.mxu0 0
    %77 = vmatpush1.bf16.msra.mxu0 0
    %78 = vmatprep.subr.bf16.mxu0 0
    %79 = vmatpush1.bf16.msra.mxu0 0
    %80 = vmatprep.subr.bf16.mxu0 0
    %81 = vmatpush1.bf16.msra.mxu0 0
    %82 = vmatprep.subr.bf16.mxu0 0
    %83 = vmatpush1.bf16.msra.mxu0 0
    %84 = vmatprep.subr.bf16.mxu0 0
    %85 = vmatpush1.bf16.msra.mxu0 0
    %86 = vmatprep.subr.bf16.mxu0 0
    %87 = vmatpush1.bf16.msra.mxu0 0
    %88 = vmatprep.subr.bf16.mxu0 0
    %89 = vmatpush1.bf16.msra.mxu0 %v69
    %90 = vmatprep.subr.bf16.mxu0 0
    %91 = vmatpush1.bf16.msra.mxu0 %v68
    %92 = vmatprep.subr.bf16.mxu0 0
    %93 = vmatpush2.bf16.msra.mxu0 0
    %94 = vmatprep.subr.bf16.mxu0 0
    %95 = vmatpush2.bf16.msra.mxu0 0
    %96 = vmatprep.subr.bf16.mxu0 0
    %97 = vmatpush2.bf16.msra.mxu0 0
    %98 = vmatprep.subr.bf16.mxu0 0
    %99 = vmatpush2.bf16.msra.mxu0 0
    %100 = vmatprep.subr.bf16.mxu0 0
    %101 = vmatpush2.bf16.msra.mxu0 0
    %102 = vmatprep.subr.bf16.mxu0 0
    %103 = vmatpush2.bf16.msra.mxu0 0
    %104 = vmatprep.subr.bf16.mxu0 0
    %105 = vmatpush2.bf16.msra.mxu0 0
    %106 = vmatprep.subr.bf16.mxu0 0
    %107 = vmatpush2.bf16.msra.mxu0 0
    %108 = vmatprep.mubr.bf16.mxu0 0
    %109 = vmatmul.mubr.bf16.gmra.mxu0 %v74
    %v110 = vpop.f32.mrf.mxu0
    %v111 = vadd.f32 0.0, %v110
    %v112 = vpop.f32.mrf.mxu0
    %v113 = vpop.f32.mrf.mxu0
    %v114 = vadd.f32 0.0, %v113
    %v115 = vpop.f32.mrf.mxu0
    %116 = vdwg.mxu0
    %v117 = vadd.f32 %v51, %v111
    %v118 = vadd.f32 %v52, %v114
    %119 = vst.msk [vmem:[#allocation2] sm:$0xff] %vm72, %v117
    %120 = vst.msk [vmem:[#allocation2 + $0x8] sm:$0xff] %vm72, %v118
    // Predicated region
    $region26: #{tpu_custom_call.1} parent=1 // pred_check
      %p121 = pneg %p44
    $region27: #{tpu_custom_call.1} parent=1 // pred_check_branch
      %123 = sbr.rel (%p121) target = $region29
    $region28: #{tpu_custom_call.1} parent=1 // pred_region
      %v124 = vld [vmem:[#allocation2] sm:$0xff]
      %v125 = vld [vmem:[#allocation2 + $0x8] sm:$0xff]
      %v126 = vld [vmem:[%s2] sm:$0x1]
      %v128 = vlaneseq
      %v129 = vshrl.u32 %v128, 7
      %v130 = vsub.s32 0, %v129
      %v131 = vrot.slane %v126, %v130
      %v133 = vadd.f32 %v124, %v131
      %v134 = vadd.f32 %v125, %v131
      %v135 = vpack.c.bf16 %v134, %v133
      %v137 = vunpack.c.l.b16 %v135
      %v138 = vunpack.c.h.b16 %v135
      %v139 = vpack.c.b16 %v137, %v137
      %v140 = vpack.c.b16 %v138, %v138
      %vm143 = vcmask 257024
      %144 = vst.msk [vmem:[#allocation8] sm:$0xf] %vm143, %v139
      %145 = vst.msk [vmem:[#allocation8 + $0x4] sm:$0xf] %vm143, %v140
    $region29: #{tpu_custom_call.1} parent=1 // pred_fallthru
      _
    // Predicated region
    $region30: #{tpu_custom_call.1} parent=1 // pred_check
      _
    $region31: #{tpu_custom_call.1} parent=1 // pred_check_branch
      %147 = sbr.rel (0) target = $region33
    $region32: #{tpu_custom_call.1} parent=1 // pred_region
      %s149 = ssub.s32 128, 128
      %150 = vsyncadd [#allocation5], %s149
      %s151 = sshll.u32 [#allocation8], 4
      %s152 = int_to_ptr.vmem [resolvable:$true] %s151
      %157 = dma.vmem_to_hbm [thread:$0]  %s152, 128, %s3, [#allocation5], 64, 64, 4
    $region33: #{tpu_custom_call.1} parent=1 // pred_fallthru
      _
    // Predicated region
    $region34: #{tpu_custom_call.1} parent=1 // pred_check
      _
    $region35: #{tpu_custom_call.1} parent=1 // pred_check_branch
      %159 = sbr.rel (0) target = $region37
    $region36: #{tpu_custom_call.1} parent=1 // pred_region
      %160 = dma.done [#allocation5], 128
    $region37: #{tpu_custom_call.1} parent=1 // pred_fallthru
      _
    %161 = vsyncpa [#allocation4], 1
    %162 = vsyncpa [#allocation7], 1
    %163 = vsyncpa [#allocation5], 1

</llo_original>
